<compile_context>
chip_gen: v7x
topology: tpu7x:2x2x1
jax: 0.10.0
libtpu: 0.0.40
codegen_flags: <defaults>
</compile_context>

<pallas_src>
import functools
import math

import jax
import jax.numpy as jnp
from jax.experimental import pallas as pl
from jax.experimental.pallas import tpu as pltpu

LANES = 128          # lane width (last dim)
SUBLANES = 8         # sublane tile height
TM_MAX = 8192        # max sublane rows per grid step -> 4 MiB f32 tile per input
NUM_CHUNKS = 2       # parallel chunks (one per v7x TensorCore)


def _pow_gamma(v, gamma):
    """v ** gamma with static gamma; integer gamma -> multiplies only (no EUP)."""
    g = float(gamma)
    if g == 0.0:
        return jnp.ones_like(v)
    if g.is_integer() and 1.0 <= g <= 16.0:
        out = v
        for _ in range(int(g) - 1):
            out = out * v
        return out
    # Non-integer gamma: fall back to exp(gamma * log(v)) on the EUP.
    return jnp.power(v, g)


def _focal_kernel(x_ref, t_ref, out_ref, *, alpha, gamma, smooth,
                  steps, last_block, rows, tm):
    p = pl.program_id(0)          # parallel chunk index
    s = pl.program_id(1)          # step within chunk (arbitrary/reduction axis)
    b = p * steps + s             # logical (unclamped) block index

    @pl.when(s == 0)
    def _init():
        out_ref[...] = jnp.zeros_like(out_ref)

    # Skip clamped duplicate blocks (when total_blocks % NUM_CHUNKS != 0 the
    # index_map clamps them onto the last real block; don't double-count it).
    @pl.when(b <= last_block)
    def _compute():
        x = x_ref[...].astype(jnp.float32)
        t = t_ref[...]                        # native dtype, no upcast

        # ---- transcendental chain: 3 EUP ops total -------------------------
        ax = jnp.abs(x)
        e = jnp.exp(-ax)                      # EUP: exp(-|x|)
        l1p = jnp.log1p(e)                    # EUP: softplus(-|x|)

        # softplus(x)  = max(x, 0)  + log1p(exp(-|x|))
        # softplus(-x) = max(-x, 0) + log1p(exp(-|x|))
        sp_pos = jnp.maximum(x, 0.0) + l1p    # softplus(x)
        sp_neg = jnp.maximum(-x, 0.0) + l1p   # softplus(-x)
        log_sig_pos = -sp_neg                 # log(sigmoid(x))
        log_sig_neg = -sp_pos                 # log(sigmoid(-x))

        # sigmoid(x) = exp(logsigmoid(x))  (EUP, frees the VALU slots the old
        # reciprocal + Newton + select path used).
        prob = jnp.exp(log_sig_pos)           # EUP
        prob = jnp.clip(prob, smooth, 1.0 - smooth)
        one_m_prob = 1.0 - prob

        # log(clamp(p, s, 1-s)) == clamp(log p, log s, log1p(-s))   (s < 0.5)
        log_prob = jnp.clip(log_sig_pos, math.log(smooth), math.log1p(-smooth))

        pos_part = _pow_gamma(one_m_prob, gamma) * log_prob       # <= 0
        neg_part = _pow_gamma(prob, gamma) * log_sig_neg          # <= 0

        # Native-dtype compares + selects (no float mask multiplies).
        loss = (jnp.where(t == 1, -pos_part, 0.0)
                + jnp.where(t == 0, (-alpha) * neg_part, 0.0))

        if rows % tm != 0:
            # Statically known partial last block: mask rows past the array end
            # (their VMEM contents are stale garbage).  Not emitted at all when
            # the tile size divides the row count.
            row_in_blk = jax.lax.broadcasted_iota(jnp.int32, loss.shape, 0)
            loss = jnp.where(b * tm + row_in_blk < rows, loss, 0.0)

        # Accumulate at (8, 128) vreg granularity: pure VPU adds, the
        # cross-sublane / cross-lane fold is deferred to the wrapper.
        part = loss.reshape(tm // SUBLANES, SUBLANES, LANES).sum(axis=0)
        out_ref[...] += part.reshape(1, SUBLANES, LANES)


def binary_focal_loss(output, target, *, alpha=3.0, gamma=2.0, smooth=1e-6,
                      tile_rows=None):
    """Pallas implementation of BinaryFocalLoss.forward (ignore_index=None, mean).

    `target` is used in its native dtype (bool is narrowed to int8); keep it
    int8/bool on the caller side to cut DMA traffic.
    """
    # TODO(synk): ignore_index mask path not implemented (module default is None).
    assert 0.0 < smooth < 0.5  # required for the clamp/log commutation trick

    n = output.size
    x_flat = jnp.ravel(output)
    t_flat = jnp.ravel(target)
    if t_flat.dtype == jnp.bool_:
        t_flat = t_flat.astype(jnp.int8)

    # Pad only up to the next multiple of one (8, 128) tile (1024 elements) so
    # rows stay sublane-aligned.  Padded targets are -1 -> neither pos (==1)
    # nor neg (==0), so they contribute exactly 0.  No copy when already aligned.
    pad_unit = SUBLANES * LANES
    n_pad = pl.cdiv(n, pad_unit) * pad_unit
    if n_pad != n:
        x_flat = jnp.pad(x_flat, (0, n_pad - n))
        t_flat = jnp.pad(t_flat, (0, n_pad - n), constant_values=-1)

    rows = n_pad // LANES                      # multiple of 8
    if tile_rows is None:
        tm = min(TM_MAX, rows)
    else:
        assert tile_rows % SUBLANES == 0 and tile_rows >= SUBLANES
        tm = min(tile_rows, rows)

    total_blocks = pl.cdiv(rows, tm)
    last_block = total_blocks - 1
    num_chunks = min(NUM_CHUNKS, total_blocks)  # parallel axis (v7x megacore)
    steps = pl.cdiv(total_blocks, num_chunks)

    x2d = x_flat.reshape(rows, LANES)
    t2d = t_flat.reshape(rows, LANES)

    def in_map(p, s):
        # Clamp so overhanging grid points never request an out-of-range DMA;
        # the kernel skips their compute via pl.when(b <= last_block).
        return (jnp.minimum(p * steps + s, last_block), 0)

    kernel = functools.partial(
        _focal_kernel, alpha=float(alpha), gamma=float(gamma),
        smooth=float(smooth), steps=steps, last_block=last_block,
        rows=rows, tm=tm)

    bytes_in = (x2d.size * x2d.dtype.itemsize + t2d.size * t2d.dtype.itemsize)
    bytes_out = num_chunks * SUBLANES * LANES * 4
    cost = pl.CostEstimate(flops=25 * n_pad,
                           transcendentals=3 * n_pad,
                           bytes_accessed=bytes_in + bytes_out)

    partial = pl.pallas_call(
        kernel,
        out_shape=jax.ShapeDtypeStruct((num_chunks, SUBLANES, LANES), jnp.float32),
        grid_spec=pltpu.PrefetchScalarGridSpec(
            num_scalar_prefetch=0,
            grid=(num_chunks, steps),
            in_specs=[
                pl.BlockSpec((tm, LANES), in_map),
                pl.BlockSpec((tm, LANES), in_map),
            ],
            out_specs=pl.BlockSpec((1, SUBLANES, LANES), lambda p, s: (p, 0, 0)),
        ),
        compiler_params=pltpu.CompilerParams(
            dimension_semantics=("parallel", "arbitrary"),
            vmem_limit_bytes=32 * 1024 * 1024,
        ),
        cost_estimate=cost,
    )(x2d, t2d)

    # Sublane + lane + chunk fold and the mean happen in the wrapper
    # (mean over the *original*, un-padded element count).
    return jnp.sum(partial) / jnp.float32(n)


def _reference(output, target, *, alpha=3.0, gamma=2.0, smooth=1e-6):
    x = output.astype(jnp.float32)
    t = target.astype(jnp.float32)
    prob = jnp.clip(jax.nn.sigmoid(x), smooth, 1.0 - smooth)
    pos_mask = (t == 1.0).astype(jnp.float32)
    neg_mask = (t == 0.0).astype(jnp.float32)
    pos_loss = -pos_mask * jnp.power(1.0 - prob, gamma) * jnp.log(prob)
    neg_loss = -alpha * neg_mask * jnp.power(prob, gamma) * jax.nn.log_sigmoid(-x)
    return jnp.mean(pos_loss + neg_loss)


if __name__ == "__main__":
    key = jax.random.PRNGKey(0)
    k1, k2, k3, k4, k5, k6 = jax.random.split(key, 6)

    # Small shapes consistent with a dense binary-segmentation head (NCHW).
    shape = (2, 4, 16, 16)                               # 2048 elems, aligned
    output = jax.random.normal(k1, shape, dtype=jnp.float32) * 2.0
    target = jax.random.bernoulli(k2, p=0.3, shape=shape).astype(jnp.float32)

    loss = binary_focal_loss(output, target, alpha=3.0, gamma=2.0)
    loss = jax.block_until_ready(loss)
    ref = _reference(output, target, alpha=3.0, gamma=2.0)
    assert jnp.allclose(loss, ref, rtol=2e-5, atol=1e-6), (loss, ref)

    # Non-aligned size: exercises the (minimal) pad + target=-1 path.
    shape2 = (2, 3, 15, 17)                              # 1530 elems
    out2 = jax.random.normal(k3, shape2, dtype=jnp.float32) * 2.0
    tgt2 = jax.random.bernoulli(k4, p=0.3, shape=shape2).astype(jnp.float32)
    l2 = jax.block_until_ready(binary_focal_loss(out2, tgt2))
    assert jnp.allclose(l2, _reference(out2, tgt2), rtol=2e-5, atol=1e-6)

    # Forced multi-block splits (small tiles) to exercise the parallel chunks,
    # the clamped-duplicate-block skip, and the partial-last-block row mask.
    shape3 = (3, 8, 16, 8)                               # 3072 elems -> 24 rows
    out3 = jax.random.normal(k5, shape3, dtype=jnp.float32) * 2.0
    tgt3 = jax.random.bernoulli(k6, p=0.3, shape=shape3).astype(jnp.float32)
    r3 = _reference(out3, tgt3)
    l3a = jax.block_until_ready(binary_focal_loss(output, target, tile_rows=8))
    assert jnp.allclose(l3a, ref, rtol=2e-5, atol=1e-6), (l3a, ref)
    l3b = jax.block_until_ready(binary_focal_loss(out3, tgt3, tile_rows=8))
    assert jnp.allclose(l3b, r3, rtol=2e-5, atol=1e-6), (l3b, r3)   # 3 blocks / 2 chunks
    l3c = jax.block_until_ready(binary_focal_loss(out3, tgt3, tile_rows=16))
    assert jnp.allclose(l3c, r3, rtol=2e-5, atol=1e-6), (l3c, r3)   # partial last block

    print("KERNEL_OK")
</pallas_src>

<mosaic_0001>
module attributes {stable_mosaic.version = 11 : i64} {
  func.func @_focal_kernel(%arg0: i32, %arg1: i32, %arg2: memref<16x128xf32, #tpu.memory_space<vmem>>, %arg3: memref<16x128xf32, #tpu.memory_space<vmem>>, %arg4: memref<1x8x128xf32, #tpu.memory_space<vmem>>) attributes {dimension_semantics = [#tpu.dimension_semantics<parallel>, #tpu.dimension_semantics<arbitrary>], iteration_bounds = array<i64: 1, 1>, scalar_prefetch = 0 : i64, scratch_operands = 0 : i64, tpu.core_type = #tpu.core_type<tc>, window_params = [{transform_indices = @transform_0, window_bounds = array<i64: 16, 128>}, {transform_indices = @transform_1, window_bounds = array<i64: 16, 128>}, {transform_indices = @transform_2, window_bounds = array<i64: 1, 8, 128>}]} {
    %c1_i32 = arith.constant 1 : i32
    %0 = arith.muli %arg0, %c1_i32 : i32
    %1 = arith.addi %0, %arg1 : i32
    %c0_i32 = arith.constant 0 : i32
    %2 = arith.cmpi eq, %arg1, %c0_i32 : i32
    %3 = arith.extui %2 : i1 to i32
    %c0_i32_0 = arith.constant 0 : i32
    %4 = arith.cmpi ne, %3, %c0_i32_0 : i32
    scf.if %4 {
      %cst = arith.constant 0.000000e+00 : f32
      %8 = vector.broadcast %cst : f32 to vector<1x8x128xf32>
      %c0 = arith.constant 0 : index
      %c0_3 = arith.constant 0 : index
      %c0_4 = arith.constant 0 : index
      %9 = vector.load %arg4[%c0, %c0_3, %c0_4] : memref<1x8x128xf32, #tpu.memory_space<vmem>>, vector<1x8x128xf32>
      tpu.vector_store %arg4[%c0, %c0_3, %c0_4], %8 {strides = array<i32>} : memref<1x8x128xf32, #tpu.memory_space<vmem>>, vector<1x8x128xf32>,
    } else {
    }
    %c0_i32_1 = arith.constant 0 : i32
    %5 = arith.cmpi sle, %1, %c0_i32_1 : i32
    %6 = arith.extui %5 : i1 to i32
    %c0_i32_2 = arith.constant 0 : i32
    %7 = arith.cmpi ne, %6, %c0_i32_2 : i32
    scf.if %7 {
      %c0 = arith.constant 0 : index
      %c0_3 = arith.constant 0 : index
      %8 = vector.load %arg2[%c0, %c0_3] : memref<16x128xf32, #tpu.memory_space<vmem>>, vector<16x128xf32>
      %c0_4 = arith.constant 0 : index
      %c0_5 = arith.constant 0 : index
      %9 = vector.load %arg3[%c0_4, %c0_5] : memref<16x128xf32, #tpu.memory_space<vmem>>, vector<16x128xf32>
      %10 = math.absf %8 : vector<16x128xf32>
      %cst = arith.constant 0.000000e+00 : f32
      %11 = vector.broadcast %cst : f32 to vector<16x128xf32>
      %12 = arith.subf %11, %10 : vector<16x128xf32>
      %13 = math.exp %12 : vector<16x128xf32>
      %14 = math.log1p %13 : vector<16x128xf32>
      %cst_6 = arith.constant 0.000000e+00 : f32
      %15 = vector.broadcast %cst_6 : f32 to vector<16x128xf32>
      %16 = arith.maximumf %8, %15 : vector<16x128xf32>
      %17 = arith.addf %16, %14 : vector<16x128xf32>
      %cst_7 = arith.constant 0.000000e+00 : f32
      %18 = vector.broadcast %cst_7 : f32 to vector<16x128xf32>
      %19 = arith.subf %18, %8 : vector<16x128xf32>
      %cst_8 = arith.constant 0.000000e+00 : f32
      %20 = vector.broadcast %cst_8 : f32 to vector<16x128xf32>
      %21 = arith.maximumf %19, %20 : vector<16x128xf32>
      %22 = arith.addf %21, %14 : vector<16x128xf32>
      %cst_9 = arith.constant 0.000000e+00 : f32
      %23 = vector.broadcast %cst_9 : f32 to vector<16x128xf32>
      %24 = arith.subf %23, %22 : vector<16x128xf32>
      %cst_10 = arith.constant 0.000000e+00 : f32
      %25 = vector.broadcast %cst_10 : f32 to vector<16x128xf32>
      %26 = arith.subf %25, %17 : vector<16x128xf32>
      %27 = math.exp %24 : vector<16x128xf32>
      %cst_11 = arith.constant 9.99999997E-7 : f32
      %cst_12 = arith.constant 0.999998986 : f32
      %28 = vector.broadcast %cst_11 : f32 to vector<16x128xf32>
      %29 = arith.maximumf %28, %27 : vector<16x128xf32>
      %30 = vector.broadcast %cst_12 : f32 to vector<16x128xf32>
      %31 = arith.minimumf %30, %29 : vector<16x128xf32>
      %cst_13 = arith.constant 1.000000e+00 : f32
      %32 = vector.broadcast %cst_13 : f32 to vector<16x128xf32>
      %33 = arith.subf %32, %31 : vector<16x128xf32>
      %cst_14 = arith.constant -13.8155107 : f32
      %cst_15 = arith.constant -1.00000045E-6 : f32
      %34 = vector.broadcast %cst_14 : f32 to vector<16x128xf32>
      %35 = arith.maximumf %34, %24 : vector<16x128xf32>
      %36 = vector.broadcast %cst_15 : f32 to vector<16x128xf32>
      %37 = arith.minimumf %36, %35 : vector<16x128xf32>
      %38 = arith.mulf %33, %33 : vector<16x128xf32>
      %39 = arith.mulf %38, %37 : vector<16x128xf32>
      %40 = arith.mulf %31, %31 : vector<16x128xf32>
      %41 = arith.mulf %40, %26 : vector<16x128xf32>
      %cst_16 = arith.constant 1.000000e+00 : f32
      %42 = vector.broadcast %cst_16 : f32 to vector<16x128xf32>
      %43 = arith.cmpf oeq, %9, %42 : vector<16x128xf32>
      %cst_17 = arith.constant 0.000000e+00 : f32
      %44 = vector.broadcast %cst_17 : f32 to vector<16x128xf32>
      %45 = arith.subf %44, %39 : vector<16x128xf32>
      %cst_18 = arith.constant 0.000000e+00 : f32
      %46 = vector.broadcast %cst_18 : f32 to vector<16x128xf32>
      %47 = arith.select %43, %45, %46 : vector<16x128xi1>, vector<16x128xf32>
      %cst_19 = arith.constant 0.000000e+00 : f32
      %48 = vector.broadcast %cst_19 : f32 to vector<16x128xf32>
      %49 = arith.cmpf oeq, %9, %48 : vector<16x128xf32>
      %cst_20 = arith.constant -3.000000e+00 : f32
      %50 = vector.broadcast %cst_20 : f32 to vector<16x128xf32>
      %51 = arith.mulf %50, %41 : vector<16x128xf32>
      %cst_21 = arith.constant 0.000000e+00 : f32
      %52 = vector.broadcast %cst_21 : f32 to vector<16x128xf32>
      %53 = arith.select %49, %51, %52 : vector<16x128xi1>, vector<16x128xf32>
      %54 = arith.addf %47, %53 : vector<16x128xf32>
      %55 = vector.shape_cast %54 : vector<16x128xf32> to vector<2x8x128xf32>
      %cst_22 = arith.constant dense<0.000000e+00> : vector<8x128xf32>
      %56 = vector.multi_reduction <add>, %55, %cst_22 [0] : vector<2x8x128xf32> to vector<8x128xf32>
      %c0_23 = arith.constant 0 : index
      %c0_24 = arith.constant 0 : index
      %c0_25 = arith.constant 0 : index
      %57 = vector.load %arg4[%c0_23, %c0_24, %c0_25] : memref<1x8x128xf32, #tpu.memory_space<vmem>>, vector<1x8x128xf32>
      %58 = vector.shape_cast %56 : vector<8x128xf32> to vector<1x8x128xf32>
      %59 = arith.addf %57, %58 : vector<1x8x128xf32>
      %c0_26 = arith.constant 0 : index
      %c0_27 = arith.constant 0 : index
      %c0_28 = arith.constant 0 : index
      %60 = vector.load %arg4[%c0_26, %c0_27, %c0_28] : memref<1x8x128xf32, #tpu.memory_space<vmem>>, vector<1x8x128xf32>
      tpu.vector_store %arg4[%c0_26, %c0_27, %c0_28], %59 {strides = array<i32>} : memref<1x8x128xf32, #tpu.memory_space<vmem>>, vector<1x8x128xf32>,
    } else {
    }
    return
  }
  func.func @transform_0(%arg0: i32, %arg1: i32) -> (i32, i32) {
    %c1_i32 = arith.constant 1 : i32
    %0 = arith.muli %arg0, %c1_i32 : i32
    %1 = arith.addi %0, %arg1 : i32
    %c0_i32 = arith.constant 0 : i32
    %2 = arith.minsi %1, %c0_i32 : i32
    %c0_i32_0 = arith.constant 0 : i32
    %c0_i32_1 = arith.constant 0 : i32
    return %2, %c0_i32_0 : i32, i32
  }
  func.func @transform_1(%arg0: i32, %arg1: i32) -> (i32, i32) {
    %c1_i32 = arith.constant 1 : i32
    %0 = arith.muli %arg0, %c1_i32 : i32
    %1 = arith.addi %0, %arg1 : i32
    %c0_i32 = arith.constant 0 : i32
    %2 = arith.minsi %1, %c0_i32 : i32
    %c0_i32_0 = arith.constant 0 : i32
    %c0_i32_1 = arith.constant 0 : i32
    return %2, %c0_i32_0 : i32, i32
  }
  func.func @transform_2(%arg0: i32, %arg1: i32) -> (i32, i32, i32) {
    %c0_i32 = arith.constant 0 : i32
    %c0_i32_0 = arith.constant 0 : i32
    %c0_i32_1 = arith.constant 0 : i32
    return %arg0, %c0_i32, %c0_i32_0 : i32, i32, i32
  }
}

</mosaic_0001>

<llo_original>
// kernel: tpu_custom_call.1
$region0: #{tpu_custom_call.1}
  #allocation0 [shape = 'u32[]', space=smem, size = 0x4, offset = 0x4, fixed_abs, tag = 'smem constant byte address 0x4 - core index']
  #allocation1 [shape = 'u32[144,128]{1,0:T(1,128)}', space=vmem, size = 0x12000, scoped, tag = 'internal scratch']
  %s0 = inlined_call_operand.hbm [shape: f32[16,128], index: 0, kind: input, shape index: {}]
  %s1 = inlined_call_operand.hbm [shape: f32[16,128], index: 1, kind: input, shape index: {}]
  %s2 = inlined_call_operand.hbm [shape: f32[1,8,128], index: 2, kind: output, shape index: {}]
  %s3 = sld [smem:[#allocation0]]
  $region34: #{tpu_custom_call.1} parent=0
    _
  %s5 = ssub.s32 1, %s3
  %s6 = scalar_select 0, %s5, %s3
  $region1: #{tpu_custom_call.1} parent=0
    #allocation2 [shape = 'u8[8192]{0}', space=vmem, size = 0x2000, scoped, tag = 'input window, operand 0, single buffered']
    #allocation3 [shape = 's32[1]{0}', space=sflag, size = 0x4, scoped, tag = 'scoped memory for tpu_custom_call.1']
    #allocation4 [shape = 's32[1]{0}', space=sflag, size = 0x4, scoped, tag = 'scoped memory for tpu_custom_call.1']
    #allocation5 [shape = 'u8[8192]{0}', space=vmem, size = 0x2000, scoped, tag = 'input window, operand 1, single buffered']
    #allocation6 [shape = 's32[1]{0}', space=sflag, size = 0x4, scoped, tag = 'scoped memory for tpu_custom_call.1']
    #allocation7 [shape = 'u8[4096]{0}', space=vmem, size = 0x1000, scoped, tag = 'output window, operand 0, single buffered']
    %7 = vsyncpa [#allocation3], 0
    %8 = vsyncpa [#allocation6], 0
    %9 = vsyncpa [#allocation4], 0
    // Predicated region
    $region2: #{tpu_custom_call.1} parent=1 // pred_check
      _
    $region3: #{tpu_custom_call.1} parent=1 // pred_check_branch
      %11 = sbr.rel (0) target = $region5
    $region4: #{tpu_custom_call.1} parent=1 // pred_region
      %s12 = sadd.s32 0, 0
      %p13 = scmp.lt.s32.totalorder %s12, 0
      %s14 = scalar_select %p13, %s12, 0
      %s15 = smul.u32 2, %s14
      %s17 = ssub.s32 256, 256
      %18 = vsyncadd [#allocation3], %s17
      %s19 = smul.addr %s15, 128
      %s20 = scalar_lea.hbm %s0, %s19
      %s21 = sshll.u32 [#allocation2], 4
      %s22 = int_to_ptr.vmem [resolvable:$true] %s21
      %27 = dma.hbm_to_vmem [thread:$0]  %s20, 256, %s22, [#allocation3], 128, 128, 8
    $region5: #{tpu_custom_call.1} parent=1 // pred_fallthru
      _
    // Predicated region
    $region6: #{tpu_custom_call.1} parent=1 // pred_check
      _
    $region7: #{tpu_custom_call.1} parent=1 // pred_check_branch
      %29 = sbr.rel (0) target = $region9
    $region8: #{tpu_custom_call.1} parent=1 // pred_region
      %s30 = sadd.s32 0, 0
      %p31 = scmp.lt.s32.totalorder %s30, 0
      %s32 = scalar_select %p31, %s30, 0
      %s33 = smul.u32 2, %s32
      %s35 = ssub.s32 256, 256
      %36 = vsyncadd [#allocation6], %s35
      %s37 = smul.addr %s33, 128
      %s38 = scalar_lea.hbm %s1, %s37
      %s39 = sshll.u32 [#allocation5], 4
      %s40 = int_to_ptr.vmem [resolvable:$true] %s39
      %45 = dma.hbm_to_vmem [thread:$0]  %s38, 256, %s40, [#allocation6], 128, 128, 8
    $region9: #{tpu_custom_call.1} parent=1 // pred_fallthru
      _
    // Predicated region
    $region10: #{tpu_custom_call.1} parent=1 // pred_check
      _
    $region11: #{tpu_custom_call.1} parent=1 // pred_check_branch
      %47 = sbr.rel (0) target = $region13
    $region12: #{tpu_custom_call.1} parent=1 // pred_region
      %48 = dma.done [#allocation3], 256
    $region13: #{tpu_custom_call.1} parent=1 // pred_fallthru
      _
    // Predicated region
    $region14: #{tpu_custom_call.1} parent=1 // pred_check
      _
    $region15: #{tpu_custom_call.1} parent=1 // pred_check_branch
      %50 = sbr.rel (0) target = $region17
    $region16: #{tpu_custom_call.1} parent=1 // pred_region
      %51 = dma.done [#allocation6], 256
    $region17: #{tpu_custom_call.1} parent=1 // pred_fallthru
      _
    %s52 = sadd.s32 0, 0
    %p53 = scmp.lt.s32.totalorder %s52, 0
    %s54 = scalar_select %p53, %s52, 0
    %s55 = smul.u32 2, %s54
    %s56 = sadd.s32 0, 0
    %p57 = scmp.lt.s32.totalorder %s56, 0
    %s58 = scalar_select %p57, %s56, 0
    %s59 = smul.u32 2, %s58
    %s60 = sadd.s32 0, 0
    %p61 = scmp.eq.s32.totalorder 0, 0
    // Predicated region
    $region18: #{tpu_custom_call.1} parent=1 // pred_check
      %p62 = pneg %p61
    $region19: #{tpu_custom_call.1} parent=1 // pred_check_branch
      %64 = sbr.rel (%p62) target = $region21
    $region20: #{tpu_custom_call.1} parent=1 // pred_region
      %65 = vst [vmem:[#allocation7] sm:$0xff] 0.0
    $region21: #{tpu_custom_call.1} parent=1 // pred_fallthru
      _
    %p66 = scmp.le.s32.totalorder %s60, 0
    // Predicated region
    $region22: #{tpu_custom_call.1} parent=1 // pred_check
      %p67 = pneg %p66
    $region23: #{tpu_custom_call.1} parent=1 // pred_check_branch
      %69 = sbr.rel (%p67) target = $region25
    $region24: #{tpu_custom_call.1} parent=1 // pred_region
      %v70 = vld [vmem:[#allocation2] sm:$0xff]
      %v71 = vld [vmem:[#allocation2 + $0x8] sm:$0xff]
      %v72 = vld [vmem:[#allocation5] sm:$0xff]
      %v73 = vld [vmem:[#allocation5 + $0x8] sm:$0xff]
      %v74 = vand.u32 2147483647, %v70
      %v75 = vand.u32 2147483647, %v71
      %v76 = vsub.f32 0.0, %v74
      %v77 = vsub.f32 0.0, %v75
      %v78 = vmul.f32 %v76, 1.442695
      %v79 = vpow.pop %v78
      %v80 = vmul.f32 %v77, 1.442695
      %v81 = vpow.pop %v80
      %v82 = vadd.f32 %v79, 1.0
      %v83 = vlog2.pop %v82
      %v84 = vmul.f32 %v83, 0.6931472
      %v85 = vmul.f32 -0.5, %v79
      %v86 = vadd.f32 %v85, 1.0
      %v87 = vmul.f32 %v86, %v79
      %v88 = vand.u32 2147483647, %v79
      %vm89 = vcmp.lt.f32.partialorder %v88, 0.0004427343
      %v90 = vsel %vm89, %v87, %v84
      %v91 = vadd.f32 %v81, 1.0
      %v92 = vlog2.pop %v91
      %v93 = vmul.f32 %v92, 0.6931472
      %v94 = vmul.f32 -0.5, %v81
      %v95 = vadd.f32 %v94, 1.0
      %v96 = vmul.f32 %v95, %v81
      %v97 = vand.u32 2147483647, %v81
      %vm98 = vcmp.lt.f32.partialorder %v97, 0.0004427343
      %v99 = vsel %vm98, %v96, %v93
      %v100 = vmax.f32 %v70, 0.0
      %v101 = vmax.f32 %v71, 0.0
      %v102 = vadd.f32 %v100, %v90
      %v103 = vadd.f32 %v101, %v99
      %v104 = vsub.f32 0.0, %v70
      %v105 = vsub.f32 0.0, %v71
      %v106 = vmax.f32 %v104, 0.0
      %v107 = vmax.f32 %v105, 0.0
      %v108 = vadd.f32 %v106, %v90
      %v109 = vadd.f32 %v107, %v99
      %v110 = vsub.f32 0.0, %v108
      %v111 = vsub.f32 0.0, %v109
      %v112 = vsub.f32 0.0, %v102
      %v113 = vsub.f32 0.0, %v103
      %v114 = vmul.f32 %v110, 1.442695
      %v115 = vpow.pop %v114
      %v116 = vmul.f32 %v111, 1.442695
      %v117 = vpow.pop %v116
      %v118 = vmax.f32 %v115, 1e-06
      %v119 = vmax.f32 %v117, 1e-06
      %v120 = vmin.f32 %v118, 0.999999
      %v121 = vmin.f32 %v119, 0.999999
      %v122 = vsub.f32 1.0, %v120
      %v123 = vsub.f32 1.0, %v121
      %v124 = vmax.f32 %v110, -13.815511
      %v125 = vmax.f32 %v111, -13.815511
      %v126 = vmin.f32 %v124, -1.0000005e-06
      %v127 = vmin.f32 %v125, -1.0000005e-06
      %v128 = vmul.f32 %v122, %v122
      %v129 = vmul.f32 %v123, %v123
      %v130 = vmul.f32 %v128, %v126
      %v131 = vmul.f32 %v129, %v127
      %v132 = vmul.f32 %v120, %v120
      %v133 = vmul.f32 %v121, %v121
      %v134 = vmul.f32 %v132, %v112
      %v135 = vmul.f32 %v133, %v113
      %vm136 = vcmp.eq.f32.partialorder %v72, 1.0
      %vm137 = vcmp.eq.f32.partialorder %v73, 1.0
      %v138 = vsub.f32 0.0, %v130
      %v139 = vsub.f32 0.0, %v131
      %v140 = vsel %vm136, %v138, 0.0
      %v141 = vsel %vm137, %v139, 0.0
      %vm142 = vcmp.eq.f32.partialorder %v72, 0.0
      %vm143 = vcmp.eq.f32.partialorder %v73, 0.0
      %v144 = vmul.f32 %v134, -3.0
      %v145 = vmul.f32 %v135, -3.0
      %v146 = vsel %vm142, %v144, 0.0
      %v147 = vsel %vm143, %v145, 0.0
      %v148 = vadd.f32 %v140, %v146
      %v149 = vadd.f32 %v141, %v147
      %v150 = vadd.f32 %v148, %v149
      %v151 = vld [vmem:[#allocation7] sm:$0xff]
      %v152 = vadd.f32 %v151, %v150
      %153 = vst [vmem:[#allocation7] sm:$0xff] %v152
    $region25: #{tpu_custom_call.1} parent=1 // pred_fallthru
      _
    // Predicated region
    $region26: #{tpu_custom_call.1} parent=1 // pred_check
      _
    $region27: #{tpu_custom_call.1} parent=1 // pred_check_branch
      %155 = sbr.rel (0) target = $region29
    $region28: #{tpu_custom_call.1} parent=1 // pred_region
      %s157 = ssub.s32 128, 128
      %158 = vsyncadd [#allocation4], %s157
      %s160 = sshll.u32 [#allocation7], 4
      %s161 = int_to_ptr.vmem [resolvable:$true] %s160
      %163 = dma.vmem_to_hbm [thread:$0]  %s161, 128, %s2, [#allocation4]
    $region29: #{tpu_custom_call.1} parent=1 // pred_fallthru
      _
    // Predicated region
    $region30: #{tpu_custom_call.1} parent=1 // pred_check
      _
    $region31: #{tpu_custom_call.1} parent=1 // pred_check_branch
      %165 = sbr.rel (0) target = $region33
    $region32: #{tpu_custom_call.1} parent=1 // pred_region
      %166 = dma.done [#allocation4], 128
    $region33: #{tpu_custom_call.1} parent=1 // pred_fallthru
      _
    %167 = vsyncpa [#allocation3], 1
    %168 = vsyncpa [#allocation6], 1
    %169 = vsyncpa [#allocation4], 1

</llo_original>
